<compile_context>
chip_gen: v5e
topology: v5e:2x2
jax: 0.10.0
libtpu: 0.0.40
codegen_flags: <defaults>
</compile_context>

<pallas_src>
import functools

import jax
import jax.numpy as jnp
from jax.experimental import pallas as pl
from jax.experimental.pallas import tpu as pltpu


def _round_up(x, m):
    return (x + m - 1) // m * m


def _h_x_linear_kernel(x_ref, w1_ref, b1_ref, w2row_ref, b2_ref, out_ref):
    """One (tile_n, F) row tile: layer1 -> tanh -> layer2 -> sum of squares."""
    i = pl.program_id(1)  # trailing reduction ("arbitrary") axis

    @pl.when(i == 0)
    def _init():
        out_ref[...] = jnp.zeros_like(out_ref)

    # --- layer1: Linear(size_in -> size_in), bf16 MXU matmul, f32 accumulate ---
    h1 = jnp.dot(x_ref[...], w1_ref[...], preferred_element_type=jnp.float32)
    h1 = jnp.tanh(h1 + b1_ref[...])                                # (tile_n, F) f32

    # --- layer2: Linear(size_in -> 1), lane-dense form (VPU mul + XLU reduce) ---
    h2 = jnp.sum(h1 * w2row_ref[...], axis=1, keepdims=True) + b2_ref[0, 0]

    # --- torch.norm(., dim=0): accumulate sum of squares over row tiles.
    # Scalar broadcast into the resident (8, 128) output block; only element
    # [0, 0] of each per-core block is read back by the wrapper.
    out_ref[...] += jnp.sum(h2 * h2)


def h_x_linear_forward(x, w1, b1, w2, b2, *, tile_n=512,
                       matmul_dtype=jnp.bfloat16):
    """out = || tanh(x @ w1 + b1) @ w2 + b2 ||_2 over dim 0  -> shape (1,).

    x  : (N, size_in) float32
    w1 : (size_in, size_in)   (in, out) layout - transpose torch's (out, in)
    b1 : (size_in,)
    w2 : (size_in, 1)
    b2 : (1,)
    """
    n, f = x.shape
    f_lanes = _round_up(f, 128)
    mm_bytes = jnp.dtype(matmul_dtype).itemsize

    # ---- per-generation VMEM budget (0.7x per-core capacity, safe fallback) ----
    try:
        info = pltpu.get_tpu_info()
        vmem_cap = int(getattr(info, "vmem_capacity_bytes", 0)) or (64 << 20)
    except Exception:
        vmem_cap = 64 << 20  # conservative: fits v5e/v6e/v7x per-core VMEM
    vmem_budget = int(min(0.7 * vmem_cap, 96 << 20))

    # row tile: multiple of 16 sublanes (bf16 packs 2 rows/sublane), capped by N
    tile_n = int(min(_round_up(tile_n, 16), _round_up(max(n, 1), 16)))

    def footprint(t):
        return (2 * t * f_lanes * mm_bytes                    # x tile, double-buffered
                + 2 * _round_up(f, 16) * f_lanes * mm_bytes   # W1 (2 pipeline bufs)
                + 4 * 8 * f_lanes * 4                         # b1 / w2 rows (padded)
                + 2 * 8 * 128 * 4                             # output blocks
                + t * f_lanes * 4                             # h1 f32 temporaries
                + (2 << 20))                                  # compiler slack

    while tile_n > 16 and footprint(tile_n) > vmem_budget:
        tile_n = max(16, _round_up(tile_n // 2, 16))

    # grid: leading axis of 2 ("parallel", one TC each on v7x; sequential on
    # v5e/v6e) x trailing reduction axis ("arbitrary", resident accumulator).
    n_tiles = pl.cdiv(n, tile_n)
    half_steps = pl.cdiv(n_tiles, 2)
    n_pad = 2 * half_steps * tile_n

    x = x.astype(matmul_dtype)
    if n_pad != n:
        x = jnp.pad(x, ((0, n_pad - n), (0, 0)))

    w1_mm = w1.astype(matmul_dtype)
    b1_row = b1.reshape(1, f).astype(jnp.float32)
    w2_row = w2.reshape(1, f).astype(jnp.float32)   # (F,1) weight as lane-dense row
    b2_smem = b2.reshape(1, 1).astype(jnp.float32)  # scalar bias via SMEM

    grid_spec = pltpu.PrefetchScalarGridSpec(
        num_scalar_prefetch=0,
        grid=(2, half_steps),
        in_specs=[
            pl.BlockSpec((tile_n, f), lambda c, i: (c * half_steps + i, 0)),  # x tile
            pl.BlockSpec((f, f), lambda c, i: (0, 0)),                        # W1 (resident)
            pl.BlockSpec((1, f), lambda c, i: (0, 0)),                        # b1 (resident)
            pl.BlockSpec((1, f), lambda c, i: (0, 0)),                        # w2 row (resident)
            pl.BlockSpec((1, 1), lambda c, i: (0, 0),
                         memory_space=pltpu.MemorySpace.SMEM),                # b2 scalar
        ],
        # one resident (8,128) partial-sum block per "core" slice of the grid
        out_specs=pl.BlockSpec((8, 128), lambda c, i: (c, 0)),
    )

    cost = pl.CostEstimate(
        flops=2 * n_pad * f * f + 6 * n_pad * f + 4 * n_pad,
        transcendentals=n_pad * f,                       # tanh
        bytes_accessed=(n_pad * f + f * f) * mm_bytes + (3 * f + 2 + 16 * 128) * 4,
    )

    partials = pl.pallas_call(
        _h_x_linear_kernel,
        out_shape=jax.ShapeDtypeStruct((16, 128), jnp.float32),
        grid_spec=grid_spec,
        compiler_params=pltpu.CompilerParams(
            dimension_semantics=("parallel", "arbitrary"),
            vmem_limit_bytes=int(min(max(footprint(tile_n), 8 << 20), vmem_budget)),
        ),
        cost_estimate=cost,
    )(x, w1_mm, b1_row, w2_row, b2_smem)

    # Combine the two per-core partial sums, subtract the exact contribution of
    # the zero-padded rows (x_pad = 0 -> h2_pad = tanh(b1) @ w2 + b2), then sqrt.
    total = partials[0, 0] + partials[8, 0]
    pad_rows = n_pad - n
    h2_pad = jnp.sum(jnp.tanh(b1_row) * w2_row) + b2_smem[0, 0]
    total = total - pad_rows * h2_pad * h2_pad
    return jnp.sqrt(jnp.maximum(total, 0.0)).reshape(1)


if __name__ == "__main__":
    # Small shapes consistent with the module: N nodes, size_in features.
    # N deliberately not a multiple of the row tile to exercise the padded-row
    # correction; small tile so the demo runs a real multi-step / two-slice grid.
    N = 100
    size_in = 32
    TILE_N = 16

    key = jax.random.PRNGKey(0)
    kx, kw1, kb1, kw2, kb2 = jax.random.split(key, 5)

    x = jax.random.normal(kx, (N, size_in), jnp.float32)

    # nn.Linear default init; parameters stored (in, out) for the kernel
    # (transpose of torch's (out, in) weight layout).
    lim = 1.0 / jnp.sqrt(size_in)
    w1 = jax.random.uniform(kw1, (size_in, size_in), jnp.float32, -lim, lim)
    b1 = jax.random.uniform(kb1, (size_in,), jnp.float32, -lim, lim)
    w2 = jax.random.uniform(kw2, (size_in, 1), jnp.float32, -lim, lim)
    b2 = jax.random.uniform(kb2, (1,), jnp.float32, -lim, lim)

    out = h_x_linear_forward(x, w1, b1, w2, b2, tile_n=TILE_N)
    out = jax.block_until_ready(out)

    # pure-JAX f32 reference of the PyTorch forward
    h1_ref = jnp.tanh(x @ w1 + b1)
    h2_ref = h1_ref @ w2 + b2
    ref = jnp.sqrt(jnp.sum(h2_ref * h2_ref, axis=0))

    assert out.shape == (1,), out.shape
    assert jnp.isfinite(out).all()
    # bf16 MXU operands -> ~1e-3 relative drift on the final norm; tolerance loosened.
    assert jnp.allclose(out, ref, rtol=3e-2, atol=3e-3), (out, ref)
    print("KERNEL_OK")
</pallas_src>

<mosaic_0001>
module attributes {stable_mosaic.version = 11 : i64} {
  func.func @_h_x_linear_kernel(%arg0: i32, %arg1: i32, %arg2: memref<16x32xbf16, #tpu.memory_space<vmem>>, %arg3: memref<32x32xbf16, #tpu.memory_space<vmem>>, %arg4: memref<1x32xf32, #tpu.memory_space<vmem>>, %arg5: memref<1x32xf32, #tpu.memory_space<vmem>>, %arg6: memref<1x1xf32, #tpu.memory_space<smem>>, %arg7: memref<8x128xf32, #tpu.memory_space<vmem>>) attributes {dimension_semantics = [#tpu.dimension_semantics<parallel>, #tpu.dimension_semantics<arbitrary>], iteration_bounds = array<i64: 2, 4>, scalar_prefetch = 0 : i64, scratch_operands = 0 : i64, tpu.core_type = #tpu.core_type<tc>, window_params = [{transform_indices = @transform_0, window_bounds = array<i64: 16, 32>}, {pipeline_mode = #tpu.pipeline_mode<synchronous>, transform_indices = @transform_1, window_bounds = array<i64: 32, 32>}, {pipeline_mode = #tpu.pipeline_mode<synchronous>, transform_indices = @transform_2, window_bounds = array<i64: 1, 32>}, {pipeline_mode = #tpu.pipeline_mode<synchronous>, transform_indices = @transform_3, window_bounds = array<i64: 1, 32>}, {transform_indices = @transform_4, window_bounds = array<i64: 1, 1>}, {transform_indices = @transform_5, window_bounds = array<i64: 8, 128>}]} {
    %c0_i32 = arith.constant 0 : i32
    %0 = arith.cmpi eq, %arg1, %c0_i32 : i32
    %1 = arith.extui %0 : i1 to i32
    %c0_i32_0 = arith.constant 0 : i32
    %2 = arith.cmpi ne, %1, %c0_i32_0 : i32
    scf.if %2 {
      %cst_16 = arith.constant 0.000000e+00 : f32
      %27 = vector.broadcast %cst_16 : f32 to vector<8x128xf32>
      %c0_17 = arith.constant 0 : index
      %c0_18 = arith.constant 0 : index
      %28 = vector.load %arg7[%c0_17, %c0_18] : memref<8x128xf32, #tpu.memory_space<vmem>>, vector<8x128xf32>
      tpu.vector_store %arg7[%c0_17, %c0_18], %27 {strides = array<i32>} : memref<8x128xf32, #tpu.memory_space<vmem>>, vector<8x128xf32>,
    } else {
    }
    %c0 = arith.constant 0 : index
    %c0_1 = arith.constant 0 : index
    %3 = vector.load %arg2[%c0, %c0_1] : memref<16x32xbf16, #tpu.memory_space<vmem>>, vector<16x32xbf16>
    %c0_2 = arith.constant 0 : index
    %c0_3 = arith.constant 0 : index
    %4 = vector.load %arg3[%c0_2, %c0_3] : memref<32x32xbf16, #tpu.memory_space<vmem>>, vector<32x32xbf16>
    %cst = arith.constant dense<0.000000e+00> : vector<16x32xf32>
    %5 = tpu.matmul %3, %4, %cst {dimension_numbers = #tpu.dot_dimension_numbers<[1], [0], [0], [1], [0, 0, 1, 1], [], []>} : vector<16x32xbf16>, vector<32x32xbf16>, vector<16x32xf32> -> vector<16x32xf32>
    %c0_4 = arith.constant 0 : index
    %c0_5 = arith.constant 0 : index
    %6 = vector.load %arg4[%c0_4, %c0_5] : memref<1x32xf32, #tpu.memory_space<vmem>>, vector<1x32xf32>
    %7 = vector.broadcast %6 : vector<1x32xf32> to vector<16x32xf32>
    %8 = arith.addf %5, %7 : vector<16x32xf32>
    %9 = math.tanh %8 : vector<16x32xf32>
    %c0_6 = arith.constant 0 : index
    %c0_7 = arith.constant 0 : index
    %10 = vector.load %arg5[%c0_6, %c0_7] : memref<1x32xf32, #tpu.memory_space<vmem>>, vector<1x32xf32>
    %11 = vector.broadcast %10 : vector<1x32xf32> to vector<16x32xf32>
    %12 = arith.mulf %9, %11 : vector<16x32xf32>
    %cst_8 = arith.constant dense<0.000000e+00> : vector<16xf32>
    %13 = vector.multi_reduction <add>, %12, %cst_8 [1] : vector<16x32xf32> to vector<16xf32>
    %14 = vector.shape_cast %13 : vector<16xf32> to vector<16x1xf32>
    %c0_9 = arith.constant 0 : index
    %c0_10 = arith.constant 0 : index
    %15 = memref.load %arg6[%c0_9, %c0_10] : memref<1x1xf32, #tpu.memory_space<smem>>
    %16 = vector.broadcast %15 : f32 to vector<16x1xf32>
    %17 = arith.addf %14, %16 : vector<16x1xf32>
    %c0_11 = arith.constant 0 : index
    %c0_12 = arith.constant 0 : index
    %18 = vector.load %arg7[%c0_11, %c0_12] : memref<8x128xf32, #tpu.memory_space<vmem>>, vector<8x128xf32>
    %19 = arith.mulf %17, %17 : vector<16x1xf32>
    %20 = vector.shape_cast %19 : vector<16x1xf32> to vector<1x16x1xf32>
    %cst_13 = arith.constant dense<0.000000e+00> : vector<1xf32>
    %21 = vector.multi_reduction <add>, %20, %cst_13 [1, 2] : vector<1x16x1xf32> to vector<1xf32>
    %22 = vector.shape_cast %21 : vector<1xf32> to vector<1x1x1xf32>
    %23 = vector.extract %22[0, 0, 0] : f32 from vector<1x1x1xf32>
    %24 = vector.broadcast %23 : f32 to vector<8x128xf32>
    %25 = arith.addf %18, %24 : vector<8x128xf32>
    %c0_14 = arith.constant 0 : index
    %c0_15 = arith.constant 0 : index
    %26 = vector.load %arg7[%c0_14, %c0_15] : memref<8x128xf32, #tpu.memory_space<vmem>>, vector<8x128xf32>
    tpu.vector_store %arg7[%c0_14, %c0_15], %25 {strides = array<i32>} : memref<8x128xf32, #tpu.memory_space<vmem>>, vector<8x128xf32>,
    return
  }
  func.func @transform_0(%arg0: i32, %arg1: i32) -> (i32, i32) {
    %c4_i32 = arith.constant 4 : i32
    %0 = arith.muli %arg0, %c4_i32 : i32
    %1 = arith.addi %0, %arg1 : i32
    %c0_i32 = arith.constant 0 : i32
    %c0_i32_0 = arith.constant 0 : i32
    return %1, %c0_i32 : i32, i32
  }
  func.func @transform_1(%arg0: i32, %arg1: i32) -> (i32, i32) {
    %c0_i32 = arith.constant 0 : i32
    %c0_i32_0 = arith.constant 0 : i32
    %c0_i32_1 = arith.constant 0 : i32
    return %c0_i32, %c0_i32_0 : i32, i32
  }
  func.func @transform_2(%arg0: i32, %arg1: i32) -> (i32, i32) {
    %c0_i32 = arith.constant 0 : i32
    %c0_i32_0 = arith.constant 0 : i32
    %c0_i32_1 = arith.constant 0 : i32
    return %c0_i32, %c0_i32_0 : i32, i32
  }
  func.func @transform_3(%arg0: i32, %arg1: i32) -> (i32, i32) {
    %c0_i32 = arith.constant 0 : i32
    %c0_i32_0 = arith.constant 0 : i32
    %c0_i32_1 = arith.constant 0 : i32
    return %c0_i32, %c0_i32_0 : i32, i32
  }
  func.func @transform_4(%arg0: i32, %arg1: i32) -> (i32, i32) {
    %c0_i32 = arith.constant 0 : i32
    %c0_i32_0 = arith.constant 0 : i32
    %c0_i32_1 = arith.constant 0 : i32
    return %c0_i32, %c0_i32_0 : i32, i32
  }
  func.func @transform_5(%arg0: i32, %arg1: i32) -> (i32, i32) {
    %c0_i32 = arith.constant 0 : i32
    %c0_i32_0 = arith.constant 0 : i32
    return %arg0, %c0_i32 : i32, i32
  }
}

</mosaic_0001>

<llo_original>
// kernel: tpu_custom_call.1
$region0: #{tpu_custom_call.1}
  #allocation0 [shape = 'u32[]', space=smem, size = 0x4, offset = 0x4, fixed_abs, tag = 'smem constant byte address 0x4 - core index']
  #allocation1 [shape = 'u32[72,128]{1,0:T(1,128)}', space=vmem, size = 0x9000, scoped, tag = 'internal scratch']
  #allocation2 [shape = 'f32[1,1]{1,0:T(1,128)S(6)}', space=smem, size = 0x200, scoped, tag = 'scoped memory for tpu_custom_call.1']
  %s0 = inlined_call_operand.vmem [shape: bf16[128,32], index: 0, kind: input, shape index: {}]
  %s1 = inlined_call_operand.vmem [shape: bf16[32,32], index: 1, kind: input, shape index: {}]
  %s2 = inlined_call_operand.vmem [shape: f32[1,32], index: 2, kind: input, shape index: {}]
  %s3 = inlined_call_operand.vmem [shape: f32[1,32], index: 3, kind: input, shape index: {}]
  %s4 = inlined_call_operand.<no memory space> [shape: f32[1,1], index: 4, kind: input, shape index: {}]
  %s5 = inlined_call_operand.hbm [shape: f32[16,128], index: 5, kind: output, shape index: {}]
  %s6 = sld [smem:[#allocation0]]
  $region57: #{tpu_custom_call.1} parent=0
    _
  %s8 = ssub.s32 1, %s6
  %s9 = scalar_select 0, %s8, %s6
  %10 = sst [smem:[#allocation2]] %s4
  $region1: #{tpu_custom_call.1} parent=0
    #allocation3 [shape = 'u8[8192]{0}', space=vmem, size = 0x2000, scoped, tag = 'output window, operand 0']
    #allocation4 [shape = 's32[2]{0}', space=sflag, size = 0x8, scoped, tag = 'scoped memory for tpu_custom_call.1']
    %11 = vsyncpa [#allocation4], 0
    %s12 = scalar_lea.sflag [#allocation4], 1
    %13 = vsyncpa %s12, 0
    loop: start=0, step=1, limit=10
    $region2: #{tpu_custom_call.1} parent=1 // loop_pre_header
      _
    $region3: #{tpu_custom_call.1} parent=1 // loop_header
      %s15 = sphi 0, %s19
      %p16 = scmp.ge.s32.totalorder %s15, 10
      %s22 = sphi 0, %s34
      %s23 = sphi 0, %s30
      %s24 = sphi 0, %s22
      %s25 = sphi 0, %s23
      %s26 = sphi 0, %s24
      %s27 = sphi 0, %s25
      %s41 = sphi 0, %s43
      %s44 = sphi 0, %s41
      %s45 = sphi 0, %s44
      %s61 = sphi 0, %s45
      %s65 = sphi 0, %s65
      %s67 = sphi 0, %s65
      %s68 = sphi 0, %s67
      %s82 = sphi 0, %s68
      %s86 = sphi 0, %s86
      %s88 = sphi 0, %s86
      %s89 = sphi 0, %s88
      %s103 = sphi 0, %s89
      %s107 = sphi 0, %s107
      %s109 = sphi 0, %s107
      %s110 = sphi 0, %s109
      %s124 = sphi 0, %s110
      %s128 = sphi 0, %s128
      %s130 = sphi 0, %s128
      %s131 = sphi 0, %s130
      %s145 = sphi 0, %s131
      %s151 = sphi 0, %s153
      %s154 = sphi 0, %s151
      %s155 = sphi 0, %s154
      %s171 = sphi 0, %s155
    $region4: #{tpu_custom_call.1} parent=1 // loop_header_branch
      %18 = sbr.rel (%p16) target = $region8
    $region5: #{tpu_custom_call.1} parent=1 // loop_body
      %s20 = ssub.s32 %s15, 1
      %s21 = ssub.s32 %s15, 2
      %s28 = sadd.s32 1, %s23
      %p29 = scmp.ge.s32.totalorder %s28, 4
      %s30 = scalar_select %p29, 0, %s28
      %s31 = sadd.s32 1, %s22
      %s32 = scalar_select %p29, %s31, %s22
      %p33 = scmp.ge.s32.totalorder %s32, 2
      %s34 = scalar_select %p33, 0, %s32
      %s35 = smul.u32 %s22, 4
      %s36 = sadd.s32 %s35, %s23
      %s37 = smul.u32 %s34, 4
      %s38 = sadd.s32 %s37, %s30
      %s39 = ssub.s32 %s36, %s38
      %p40 = scmp.eq.s32.totalorder %s39, 0
      %s42 = sadd.s32 %s41, 1
      %s43 = scalar_select %p40, %s41, %s42
      %p46 = pneg %p40
      %p47 = scmp.eq.s32.totalorder %s15, 7
      %p48 = por %p46, %p47
      %p49 = scmp.ne.s32.totalorder %s41, %s44
      %p50 = scmp.eq.s32.totalorder %s15, 0
      %p51 = por %p49, %p50
      %p52 = scmp.ne.s32.totalorder %s41, %s44
      %p53 = scmp.eq.s32.totalorder %s20, 7
      %p54 = por %p52, %p53
      %p55 = scmp.ne.s32.totalorder %s44, %s45
      %p56 = scmp.eq.s32.totalorder %s20, 0
      %p57 = por %p55, %p56
      %p58 = scmp.ne.s32.totalorder %s44, %s45
      %p59 = scmp.eq.s32.totalorder %s21, 7
      %p60 = por %p58, %p59
      %p62 = scmp.ne.s32.totalorder %s45, %s61
      %p63 = scmp.eq.s32.totalorder %s21, 0
      %p64 = por %p62, %p63
      %s66 = sadd.s32 %s65, 1
      %p69 = scmp.eq.s32.totalorder %s15, 7
      %p70 = scmp.ne.s32.totalorder %s65, %s67
      %p71 = scmp.eq.s32.totalorder %s15, 0
      %p72 = por %p70, %p71
      %p73 = scmp.ne.s32.totalorder %s65, %s67
      %p74 = scmp.eq.s32.totalorder %s20, 7
      %p75 = por %p73, %p74
      %p76 = scmp.ne.s32.totalorder %s67, %s68
      %p77 = scmp.eq.s32.totalorder %s20, 0
      %p78 = por %p76, %p77
      %p79 = scmp.ne.s32.totalorder %s67, %s68
      %p80 = scmp.eq.s32.totalorder %s21, 7
      %p81 = por %p79, %p80
      %p83 = scmp.ne.s32.totalorder %s68, %s82
      %p84 = scmp.eq.s32.totalorder %s21, 0
      %p85 = por %p83, %p84
      %s87 = sadd.s32 %s86, 1
      %p90 = scmp.eq.s32.totalorder %s15, 7
      %p91 = scmp.ne.s32.totalorder %s86, %s88
      %p92 = scmp.eq.s32.totalorder %s15, 0
      %p93 = por %p91, %p92
      %p94 = scmp.ne.s32.totalorder %s86, %s88
      %p95 = scmp.eq.s32.totalorder %s20, 7
      %p96 = por %p94, %p95
      %p97 = scmp.ne.s32.totalorder %s88, %s89
      %p98 = scmp.eq.s32.totalorder %s20, 0
      %p99 = por %p97, %p98
      %p100 = scmp.ne.s32.totalorder %s88, %s89
      %p101 = scmp.eq.s32.totalorder %s21, 7
      %p102 = por %p100, %p101
      %p104 = scmp.ne.s32.totalorder %s89, %s103
      %p105 = scmp.eq.s32.totalorder %s21, 0
      %p106 = por %p104, %p105
      %s108 = sadd.s32 %s107, 1
      %p111 = scmp.eq.s32.totalorder %s15, 7
      %p112 = scmp.ne.s32.totalorder %s107, %s109
      %p113 = scmp.eq.s32.totalorder %s15, 0
      %p114 = por %p112, %p113
      %p115 = scmp.ne.s32.totalorder %s107, %s109
      %p116 = scmp.eq.s32.totalorder %s20, 7
      %p117 = por %p115, %p116
      %p118 = scmp.ne.s32.totalorder %s109, %s110
      %p119 = scmp.eq.s32.totalorder %s20, 0
      %p120 = por %p118, %p119
      %p121 = scmp.ne.s32.totalorder %s109, %s110
      %p122 = scmp.eq.s32.totalorder %s21, 7
      %p123 = por %p121, %p122
      %p125 = scmp.ne.s32.totalorder %s110, %s124
      %p126 = scmp.eq.s32.totalorder %s21, 0
      %p127 = por %p125, %p126
      %s129 = sadd.s32 %s128, 1
      %p132 = scmp.eq.s32.totalorder %s15, 7
      %p133 = scmp.ne.s32.totalorder %s128, %s130
      %p134 = scmp.eq.s32.totalorder %s15, 0
      %p135 = por %p133, %p134
      %p136 = scmp.ne.s32.totalorder %s128, %s130
      %p137 = scmp.eq.s32.totalorder %s20, 7
      %p138 = por %p136, %p137
      %p139 = scmp.ne.s32.totalorder %s130, %s131
      %p140 = scmp.eq.s32.totalorder %s20, 0
      %p141 = por %p139, %p140
      %p142 = scmp.ne.s32.totalorder %s130, %s131
      %p143 = scmp.eq.s32.totalorder %s21, 7
      %p144 = por %p142, %p143
      %p146 = scmp.ne.s32.totalorder %s131, %s145
      %p147 = scmp.eq.s32.totalorder %s21, 0
      %p148 = por %p146, %p147
      %s149 = ssub.s32 %s22, %s34
      %p150 = scmp.eq.s32.totalorder %s149, 0
      %s152 = sadd.s32 %s151, 1
      %s153 = scalar_select %p150, %s151, %s152
      %p156 = pneg %p150
      %p157 = scmp.eq.s32.totalorder %s15, 7
      %p158 = por %p156, %p157
      %p159 = scmp.ne.s32.totalorder %s151, %s154
      %p160 = scmp.eq.s32.totalorder %s15, 0
      %p161 = por %p159, %p160
      %p162 = scmp.ne.s32.totalorder %s151, %s154
      %p163 = scmp.eq.s32.totalorder %s20, 7
      %p164 = por %p162, %p163
      %p165 = scmp.ne.s32.totalorder %s154, %s155
      %p166 = scmp.eq.s32.totalorder %s20, 0
      %p167 = por %p165, %p166
      %p168 = scmp.ne.s32.totalorder %s154, %s155
      %p169 = scmp.eq.s32.totalorder %s21, 7
      %p170 = por %p168, %p169
      %p172 = scmp.ne.s32.totalorder %s155, %s171
      %p173 = scmp.eq.s32.totalorder %s21, 0
      %p174 = por %p172, %p173
      %p175 = scmp.le.s32.totalorder 1, %s15
      %p176 = scmp.lt.s32.totalorder %s15, 9
      %p177 = pnand %p175, %p176
      %p178 = pneg %p177
      // Predicated region
      $region9: #{tpu_custom_call.1} parent=5 // pred_check
        _
      $region10: #{tpu_custom_call.1} parent=5 // pred_check_branch
        %180 = sbr.rel (%p177) target = $region12
      $region11: #{tpu_custom_call.1} parent=5 // pred_region
        %s181 = ssub.s32 %s15, 1
        // Predicated region
        $region13: #{tpu_custom_call.1} parent=11 // pred_check
          %p182 = pneg %p78
        $region14: #{tpu_custom_call.1} parent=11 // pred_check_branch
          %184 = sbr.rel (%p182) target = $region16
        $region15: #{tpu_custom_call.1} parent=11 // pred_region
          _
        $region16: #{tpu_custom_call.1} parent=11 // pred_fallthru
          _
        // Predicated region
        $region17: #{tpu_custom_call.1} parent=11 // pred_check
          %p185 = pneg %p99
        $region18: #{tpu_custom_call.1} parent=11 // pred_check_branch
          %187 = sbr.rel (%p185) target = $region20
        $region19: #{tpu_custom_call.1} parent=11 // pred_region
          _
        $region20: #{tpu_custom_call.1} parent=11 // pred_fallthru
          _
        // Predicated region
        $region21: #{tpu_custom_call.1} parent=11 // pred_check
          %p188 = pneg %p120
        $region22: #{tpu_custom_call.1} parent=11 // pred_check_branch
          %190 = sbr.rel (%p188) target = $region24
        $region23: #{tpu_custom_call.1} parent=11 // pred_region
          _
        $region24: #{tpu_custom_call.1} parent=11 // pred_fallthru
          _
        // Predicated region
        $region25: #{tpu_custom_call.1} parent=11 // pred_check
          %p191 = pneg %p141
        $region26: #{tpu_custom_call.1} parent=11 // pred_check_branch
          %193 = sbr.rel (%p191) target = $region28
        $region27: #{tpu_custom_call.1} parent=11 // pred_region
          _
        $region28: #{tpu_custom_call.1} parent=11 // pred_fallthru
          _
      $region12: #{tpu_custom_call.1} parent=5 // pred_fallthru
        _
      %p194 = scmp.lt.s32.totalorder %s15, 8
      // Predicated region
      $region29: #{tpu_custom_call.1} parent=5 // pred_check
        %p195 = pneg %p194
      $region30: #{tpu_custom_call.1} parent=5 // pred_check_branch
        %197 = sbr.rel (%p195) target = $region32
      $region31: #{tpu_custom_call.1} parent=5 // pred_region
        // Predicated region
        $region33: #{tpu_custom_call.1} parent=31 // pred_check
          %p198 = pneg %p51
        $region34: #{tpu_custom_call.1} parent=31 // pred_check_branch
          %200 = sbr.rel (%p198) target = $region36
        $region35: #{tpu_custom_call.1} parent=31 // pred_region
          %s201 = smul.u32 %s22, 4
          %s202 = sadd.s32 %s201, %s23
          %s203 = smul.u32 2, %s202
          %p204 = scmp.lt.s32.totalorder %s203, 15
          %s205 = scalar_select %p204, %s203, 15
          %s206 = smul.addr %s205, 4
          %s207 = scalar_lea.vmem %s0, %s206
          %s208 = smul.u32 %s22, 4
          %s209 = sadd.s32 %s208, %s23
          %s210 = smul.u32 2, %s209
        $region36: #{tpu_custom_call.1} parent=31 // pred_fallthru
          _
      $region32: #{tpu_custom_call.1} parent=5 // pred_fallthru
        _
      %p211 = scmp.le.s32.totalorder 1, %s15
      %p212 = scmp.lt.s32.totalorder %s15, 9
      %p213 = pnand %p211, %p212
      %p214 = pneg %p213
      // Predicated region
      $region37: #{tpu_custom_call.1} parent=5 // pred_check
        _
      $region38: #{tpu_custom_call.1} parent=5 // pred_check_branch
        %216 = sbr.rel (%p213) target = $region40
      $region39: #{tpu_custom_call.1} parent=5 // pred_region
        %s217 = ssub.s32 %s15, 1
        %s218 = smul.u32 %s24, 4
        %s219 = sadd.s32 %s218, %s25
        %s220 = smul.u32 2, %s219
        %p221 = scmp.lt.s32.totalorder %s220, 15
        %s222 = scalar_select %p221, %s220, 15
        %s223 = smul.addr %s222, 4
        %s224 = scalar_lea.vmem %s0, %s223
        %p225 = pneg %p57
        %p226 = pneg %p54
        %p227 = pneg %p78
        %p228 = pneg %p75
        %p229 = pneg %p99
        %p230 = pneg %p96
        %p231 = pneg %p120
        %p232 = pneg %p117
        %p233 = pneg %p141
        %p234 = pneg %p138
        %p235 = pneg %p167
        %p236 = pneg %p164
        %s237 = sand.u32 %s154, 1
        %s238 = scalar_lea.sflag [#allocation4], %s237
        %s239 = sand.u32 %s154, 1
        %s240 = smul.addr %s239, 8
        %s241 = scalar_lea.vmem [#allocation3], %s240
        %s242 = smul.u32 %s24, 4
        %s243 = sadd.s32 %s242, %s25
        %s244 = smul.u32 2, %s243
        %p245 = scmp.lt.s32.totalorder %s244, 15
        %s246 = scalar_select %p245, %s244, 15
        %s247 = smul.addr %s246, 4
        %s248 = scalar_lea.vmem %s0, %s247
        %s249 = smul.u32 %s24, 4
        %s250 = sadd.s32 %s249, %s25
        %s251 = smul.u32 2, %s250
        %p253 = scmp.eq.s32.totalorder %s25, 0
        // Predicated region
        $region41: #{tpu_custom_call.1} parent=39 // pred_check
          %p254 = pneg %p253
        $region42: #{tpu_custom_call.1} parent=39 // pred_check_branch
          %256 = sbr.rel (%p254) target = $region44
        $region43: #{tpu_custom_call.1} parent=39 // pred_region
          %257 = vst [vmem:[%s241] sm:$0xff] 0.0
        $region44: #{tpu_custom_call.1} parent=39 // pred_fallthru
          _
        %v258 = vld [vmem:[%s248] sm:$0xf]
        %v259 = vld [vmem:[%s248 + $0x4] sm:$0xf]
        %v260 = vld [vmem:[%s1] sm:$0xf]
        %v261 = vld [vmem:[%s1 + $0x4] sm:$0xf]
        %v262 = vld [vmem:[%s1 + $0x8] sm:$0xf]
        %v263 = vld [vmem:[%s1 + $0xc] sm:$0xf]
        %v264 = vld [vmem:[%s2] sm:$0x1]
        %v266 = vperm.slane %v264, 0
        %v270 = vunpack.c.l.b16 %v258
        %v271 = vunpack.c.l.b16 %v259
        %v272 = vpack.c.b16 %v271, %v270
        %v277 = vunpack.c.l.b16 %v260
        %v278 = vunpack.c.l.b16 %v261
        %v279 = vunpack.c.l.b16 %v262
        %v280 = vunpack.c.l.b16 %v263
        %v281 = vpack.c.b16 %v278, %v277
        %v282 = vpack.c.b16 %v280, %v279
        %vm285 = vcmask 261120
        %v287 = vsel %vm285, %v272, 0
        %289 = vmatpush.bf16.msra.mxu0 0
        %290 = vmatpush.bf16.msra.mxu0 0
        %291 = vmatpush.bf16.msra.mxu0 0
        %292 = vmatpush.bf16.msra.mxu0 0
        %293 = vmatpush.bf16.msra.mxu0 0
        %294 = vmatpush.bf16.msra.mxu0 0
        %295 = vmatpush.bf16.msra.mxu0 %v282
        %296 = vmatpush.bf16.msra.mxu0 %v281
        %297 = vmatmul.bf16.gmra.mxu0 %v287
        %v298 = vpop.f32.mrf.mxu0
        %v299 = vadd.f32 %v266, %v298
        %v300 = vpop.f32.mrf.mxu0
        %v301 = vadd.f32 %v266, %v300
        %302 = vdwg.mxu0
        %v303 = vtanh.pop %v299
        %v304 = vtanh.pop %v301
        %v305 = vld [vmem:[%s3] sm:$0x1]
        %v307 = vperm.slane %v305, 0
        %v309 = vmul.f32 %v303, %v307
        %v310 = vmul.f32 %v304, %v307
        %v311 = vsel %vm285, %v309, 0.0
        %312 = vadd.xlane.f32.xlu0 %v311
        %v313 = vpop.xlane.xlu0 %312
        %v314 = vsel %vm285, %v310, 0.0
        %315 = vadd.xlane.f32.xlu0 %v314
        %v316 = vpop.xlane.xlu0 %315
        %s317 = sld [smem:[#allocation2]]
        %v318 = vstv %s317
        %v319 = vadd.f32 %v313, %v318
        %v320 = vadd.f32 %v316, %v318
        %v321 = vld [vmem:[%s241] sm:$0xff]
        %v322 = vmul.f32 %v319, %v319
        %v323 = vmul.f32 %v320, %v320
        %vm324 = vcmask 7168
        %v325 = vsel %vm324, %v322, 0.0
        %v326 = vsel %vm324, %v323, 0.0
        %v327 = vadd.f32 %v325, %v326
        %328 = vadd.xlane.f32.xlu0 %v327
        %v329 = vpop.xlane.xlu0 %328
        %v330 = vrot.slane %v329, 4
        %v331 = vadd.f32 %v329, %v330
        %v332 = vrot.slane %v331, 2
        %v333 = vadd.f32 %v331, %v332
        %v334 = vrot.slane %v333, 1
        %v335 = vadd.f32 %v333, %v334
        %s336 = vtos %v335
        %v337 = vstv %s336
        %v338 = vadd.f32 %v321, %v337
        %339 = vst [vmem:[%s241] sm:$0xff] %v338
        %s340 = sand.u32 %s154, 1
        %s341 = scalar_lea.sflag [#allocation4], %s340
        %s342 = sand.u32 %s154, 1
        %s343 = smul.addr %s342, 8
        %s344 = scalar_lea.vmem [#allocation3], %s343
        // Predicated region
        $region45: #{tpu_custom_call.1} parent=39 // pred_check
          %p345 = pneg %p164
        $region46: #{tpu_custom_call.1} parent=39 // pred_check_branch
          %347 = sbr.rel (%p345) target = $region48
        $region47: #{tpu_custom_call.1} parent=39 // pred_region
          %349 = vsyncadd %s341, 0
          %s350 = smul.addr %s24, 8
          %s351 = scalar_lea.hbm %s5, %s350
          %s353 = sshll.u32 %s344, 4
          %s354 = int_to_ptr.vmem [resolvable:$true] %s353
          %s355 = sshll.u32 %s351, 4
          %s356 = int_to_ptr.hbm [resolvable:$true] %s355
          %358 = dma.vmem_to_hbm [thread:$0]  %s354, 128, %s356, %s341
        $region48: #{tpu_custom_call.1} parent=39 // pred_fallthru
          _
      $region40: #{tpu_custom_call.1} parent=5 // pred_fallthru
        _
      %p359 = scmp.le.s32.totalorder 2, %s15
      // Predicated region
      $region49: #{tpu_custom_call.1} parent=5 // pred_check
        %p360 = pneg %p359
      $region50: #{tpu_custom_call.1} parent=5 // pred_check_branch
        %362 = sbr.rel (%p360) target = $region52
      $region51: #{tpu_custom_call.1} parent=5 // pred_region
        %s363 = ssub.s32 %s15, 2
        // Predicated region
        $region53: #{tpu_custom_call.1} parent=51 // pred_check
          %p364 = pneg %p170
        $region54: #{tpu_custom_call.1} parent=51 // pred_check_branch
          %366 = sbr.rel (%p364) target = $region56
        $region55: #{tpu_custom_call.1} parent=51 // pred_region
          %s367 = sand.u32 %s155, 1
          %s368 = scalar_lea.sflag [#allocation4], %s367
          %s369 = sand.u32 %s155, 1
          %s370 = smul.addr %s369, 8
          %s371 = scalar_lea.vmem [#allocation3], %s370
          %373 = dma.done %s368, 128
        $region56: #{tpu_custom_call.1} parent=51 // pred_fallthru
          _
      $region52: #{tpu_custom_call.1} parent=5 // pred_fallthru
        _
    $region6: #{tpu_custom_call.1} parent=1 // loop_footer
      %s19 = sadd.s32 1, %s15
    $region7: #{tpu_custom_call.1} parent=1 // loop_footer_branch
      %14 = sbr.rel target = $region3
    $region8: #{tpu_custom_call.1} parent=1 // loop_exit
      _
    %374 = vsyncpa [#allocation4], 1
    %s375 = scalar_lea.sflag [#allocation4], 1
    %376 = vsyncpa %s375, 1

</llo_original>
